<compile_context>
chip_gen: v7x
topology: tpu7x:2x2x1
jax: 0.10.0
libtpu: 0.0.40
codegen_flags: <defaults>
</compile_context>

<pallas_src>
import math

import jax
import jax.numpy as jnp
from jax.experimental import pallas as pl
from jax.experimental.pallas import tpu as pltpu


def _layer_scale_kernel(x_ref, g_ref, o_ref):
    # x_ref: (tm, td), g_ref: (1, td) -> sublane-broadcast multiply on the VPU.
    o_ref[...] = x_ref[...] * g_ref[...]


def layer_scale(x, gamma, *, target_block_bytes=4 * 1024 * 1024):
    """Compute x * gamma with gamma broadcast over the last axis.

    x: (..., D) array; gamma: (D,) array.
    """
    orig_shape = x.shape
    D = orig_shape[-1]
    assert gamma.shape == (D,), (gamma.shape, D)

    gamma = gamma.astype(x.dtype)
    itemsize = jnp.dtype(x.dtype).itemsize
    sublane = max(8, 32 // itemsize)          # f32: 8, bf16: 16, int8/fp8: 32
    n_elems = x.size
    rows0 = n_elems // D

    # ---- Lane-densify the trailing (lane) dimension ------------------------
    # Fold `r` consecutive logical rows into one physical row so the trailing
    # dim is a multiple of 128 (full lanes, unmasked stores). gamma is tiled
    # `r` times to keep the math identical.
    if D % 128 == 0:
        width, g_row = D, gamma
    else:
        r = 128 // math.gcd(D, 128)           # smallest fold with D*r % 128 == 0
        if rows0 % r == 0:
            width, g_row = D * r, jnp.tile(gamma, r)
        else:
            width, g_row = D, gamma           # fallback: full-D blocks

    rows = n_elems // width
    x2d = x.reshape(rows, width)
    g2d = g_row.reshape(1, width)

    # ---- Tile sizes ---------------------------------------------------------
    # ~4 MiB per activation block: big enough to amortize per-step overhead,
    # small enough that double-buffered (in + out) blocks fit scoped VMEM on
    # every generation (including v7x's 64 MiB physical VMEM).
    td = width
    if width % 128 == 0 and width * itemsize * sublane > target_block_bytes:
        td = max(128, (target_block_bytes // (sublane * itemsize)) // 128 * 128)
        td = min(td, width)

    tm = target_block_bytes // (td * itemsize)
    tm = max(sublane, (tm // sublane) * sublane)   # sublane-aligned row tile
    if rows <= tm:
        tm = rows                                   # full first dim is always legal

    grid = (pl.cdiv(rows, tm), pl.cdiv(width, td))

    cost = pl.CostEstimate(
        flops=n_elems,
        transcendentals=0,
        bytes_accessed=2 * n_elems * itemsize + width * itemsize,
    )

    out = pl.pallas_call(
        _layer_scale_kernel,
        out_shape=jax.ShapeDtypeStruct((rows, width), x.dtype),
        grid_spec=pltpu.PrefetchScalarGridSpec(
            num_scalar_prefetch=0,
            grid=grid,
            in_specs=[
                pl.BlockSpec((tm, td), lambda i, j: (i, j)),
                pl.BlockSpec((1, td), lambda i, j: (0, j)),  # tiny, constant over rows
            ],
            out_specs=pl.BlockSpec((tm, td), lambda i, j: (i, j)),
        ),
        compiler_params=pltpu.CompilerParams(
            dimension_semantics=("parallel", "parallel"),
            vmem_limit_bytes=48 * 1024 * 1024,
        ),
        cost_estimate=cost,
    )(x2d, g2d)

    return out.reshape(orig_shape)


if __name__ == "__main__":
    key = jax.random.PRNGKey(0)

    # Module params: dim, init_values (deterministic init, as in __init__).
    dim = 32
    init_values = 1e-05
    gamma = init_values * jnp.ones((dim,), dtype=jnp.float32)

    # Example input: (batch=2, seq=8, hidden=32), channels-last layout.
    x = jax.random.normal(key, (2, 8, dim), dtype=jnp.float32)

    out = layer_scale(x, gamma)
    out = jax.block_until_ready(out)

    # Correctness check against plain-JAX reference.
    ref = x * gamma
    assert out.shape == x.shape
    assert out.dtype == x.dtype
    assert jnp.allclose(out, ref, atol=1e-7, rtol=1e-6)

    print("KERNEL_OK")
</pallas_src>

<mosaic_0001>
module attributes {stable_mosaic.version = 11 : i64} {
  func.func @_layer_scale_kernel(%arg0: i32, %arg1: i32, %arg2: memref<4x128xf32, #tpu.memory_space<vmem>>, %arg3: memref<1x128xf32, #tpu.memory_space<vmem>>, %arg4: memref<4x128xf32, #tpu.memory_space<vmem>>) attributes {dimension_semantics = [#tpu.dimension_semantics<parallel>, #tpu.dimension_semantics<parallel>], iteration_bounds = array<i64: 1, 1>, scalar_prefetch = 0 : i64, scratch_operands = 0 : i64, tpu.core_type = #tpu.core_type<tc>, window_params = [{transform_indices = @transform_0, window_bounds = array<i64: 4, 128>}, {transform_indices = @transform_1, window_bounds = array<i64: 1, 128>}, {transform_indices = @transform_2, window_bounds = array<i64: 4, 128>}]} {
    %c0 = arith.constant 0 : index
    %c0_0 = arith.constant 0 : index
    %0 = vector.load %arg2[%c0, %c0_0] : memref<4x128xf32, #tpu.memory_space<vmem>>, vector<4x128xf32>
    %c0_1 = arith.constant 0 : index
    %c0_2 = arith.constant 0 : index
    %1 = vector.load %arg3[%c0_1, %c0_2] : memref<1x128xf32, #tpu.memory_space<vmem>>, vector<1x128xf32>
    %2 = vector.broadcast %1 : vector<1x128xf32> to vector<4x128xf32>
    %3 = arith.mulf %0, %2 : vector<4x128xf32>
    %c0_3 = arith.constant 0 : index
    %c0_4 = arith.constant 0 : index
    %4 = vector.load %arg4[%c0_3, %c0_4] : memref<4x128xf32, #tpu.memory_space<vmem>>, vector<4x128xf32>
    tpu.vector_store %arg4[%c0_3, %c0_4], %3 {strides = array<i32>} : memref<4x128xf32, #tpu.memory_space<vmem>>, vector<4x128xf32>,
    return
  }
  func.func @transform_0(%arg0: i32, %arg1: i32) -> (i32, i32) {
    %c0_i32 = arith.constant 0 : i32
    return %arg0, %arg1 : i32, i32
  }
  func.func @transform_1(%arg0: i32, %arg1: i32) -> (i32, i32) {
    %c0_i32 = arith.constant 0 : i32
    %c0_i32_0 = arith.constant 0 : i32
    return %c0_i32, %arg1 : i32, i32
  }
  func.func @transform_2(%arg0: i32, %arg1: i32) -> (i32, i32) {
    %c0_i32 = arith.constant 0 : i32
    return %arg0, %arg1 : i32, i32
  }
}

</mosaic_0001>

<llo_original>
// kernel: tpu_custom_call.1
$region0: #{tpu_custom_call.1}
  #allocation0 [shape = 'u32[]', space=smem, size = 0x4, offset = 0x4, fixed_abs, tag = 'smem constant byte address 0x4 - core index']
  #allocation1 [shape = 'u32[144,128]{1,0:T(1,128)}', space=vmem, size = 0x12000, scoped, tag = 'internal scratch']
  %s0 = inlined_call_operand.hbm [shape: f32[4,128], index: 0, kind: input, shape index: {}]
  %s1 = inlined_call_operand.vmem [shape: f32[1,128], index: 1, kind: input, shape index: {}]
  %s2 = inlined_call_operand.hbm [shape: f32[4,128], index: 2, kind: output, shape index: {}]
  %s3 = sld [smem:[#allocation0]]
  $region22: #{tpu_custom_call.1} parent=0
    _
  %s5 = ssub.s32 1, %s3
  %s6 = scalar_select 0, %s5, %s3
  $region1: #{tpu_custom_call.1} parent=0
    #allocation2 [shape = 'u8[2048]{0}', space=vmem, size = 0x800, scoped, tag = 'input window, operand 0, single buffered']
    #allocation3 [shape = 's32[1]{0}', space=sflag, size = 0x4, scoped, tag = 'scoped memory for tpu_custom_call.1']
    #allocation4 [shape = 's32[1]{0}', space=sflag, size = 0x4, scoped, tag = 'scoped memory for tpu_custom_call.1']
    #allocation5 [shape = 'u8[2048]{0}', space=vmem, size = 0x800, scoped, tag = 'output window, operand 0, single buffered']
    %7 = vsyncpa [#allocation3], 0
    %8 = vsyncpa [#allocation4], 0
    // Predicated region
    $region2: #{tpu_custom_call.1} parent=1 // pred_check
      _
    $region3: #{tpu_custom_call.1} parent=1 // pred_check_branch
      %10 = sbr.rel (0) target = $region5
    $region4: #{tpu_custom_call.1} parent=1 // pred_region
      %s12 = ssub.s32 64, 64
      %13 = vsyncadd [#allocation3], %s12
      %s15 = sshll.u32 [#allocation2], 4
      %s16 = int_to_ptr.vmem [resolvable:$true] %s15
      %18 = dma.hbm_to_vmem [thread:$0]  %s0, 64, %s16, [#allocation3]
    $region5: #{tpu_custom_call.1} parent=1 // pred_fallthru
      _
    // Predicated region
    $region6: #{tpu_custom_call.1} parent=1 // pred_check
      _
    $region7: #{tpu_custom_call.1} parent=1 // pred_check_branch
      %20 = sbr.rel (0) target = $region9
    $region8: #{tpu_custom_call.1} parent=1 // pred_region
      _
    $region9: #{tpu_custom_call.1} parent=1 // pred_fallthru
      _
    // Predicated region
    $region10: #{tpu_custom_call.1} parent=1 // pred_check
      _
    $region11: #{tpu_custom_call.1} parent=1 // pred_check_branch
      %22 = sbr.rel (0) target = $region13
    $region12: #{tpu_custom_call.1} parent=1 // pred_region
      %23 = dma.done [#allocation3], 64
    $region13: #{tpu_custom_call.1} parent=1 // pred_fallthru
      _
    %v24 = vld [vmem:[#allocation2] sm:$0xf]
    %v25 = vld [vmem:[%s1] sm:$0x1]
    %v27 = vlaneseq
    %v28 = vshrl.u32 %v27, 7
    %v29 = vsub.s32 0, %v28
    %v30 = vrot.slane %v25, %v29
    %v32 = vmul.f32 %v24, %v30
    %33 = vst [vmem:[#allocation5] sm:$0xf] %v32
    // Predicated region
    $region14: #{tpu_custom_call.1} parent=1 // pred_check
      _
    $region15: #{tpu_custom_call.1} parent=1 // pred_check_branch
      %35 = sbr.rel (0) target = $region17
    $region16: #{tpu_custom_call.1} parent=1 // pred_region
      %s37 = ssub.s32 64, 64
      %38 = vsyncadd [#allocation4], %s37
      %s40 = sshll.u32 [#allocation5], 4
      %s41 = int_to_ptr.vmem [resolvable:$true] %s40
      %43 = dma.vmem_to_hbm [thread:$0]  %s41, 64, %s2, [#allocation4]
    $region17: #{tpu_custom_call.1} parent=1 // pred_fallthru
      _
    // Predicated region
    $region18: #{tpu_custom_call.1} parent=1 // pred_check
      _
    $region19: #{tpu_custom_call.1} parent=1 // pred_check_branch
      %45 = sbr.rel (0) target = $region21
    $region20: #{tpu_custom_call.1} parent=1 // pred_region
      %46 = dma.done [#allocation4], 64
    $region21: #{tpu_custom_call.1} parent=1 // pred_fallthru
      _
    %47 = vsyncpa [#allocation3], 1
    %48 = vsyncpa [#allocation4], 1

</llo_original>
